<compile_context>
chip_gen: v5e
topology: v5e:2x2
jax: 0.10.0
libtpu: 0.0.40
codegen_flags: <defaults>
</compile_context>

<pallas_src>
import jax
import jax.numpy as jnp
from jax.experimental import pallas as pl
from jax.experimental.pallas import tpu as pltpu

POWER = 3                # matches PowerReLU(power=3) default
LANES = 128              # last dim maps to the 128-lane axis
TARGET_BLOCK_BYTES = 2 * 1024 * 1024  # ~2 MiB per input block
# 4 live buffers (in+out, double-buffered) at 2 MiB each = 8 MiB VMEM:
# comfortably under the scoped default on v5e (16 MiB), v6e/v7x (32 MiB).


def _power_relu_kernel(x_ref, o_ref):
    x = x_ref[...]
    y = jnp.maximum(x, jnp.zeros_like(x))   # relu
    # integer power=3 -> two multiplies on the VPU (free under the DMA stream;
    # do NOT use jnp.power / exp-log, which would serialize through the EUP)
    o_ref[...] = y * y * y


def _choose_tm(rows: int, itemsize: int) -> int:
    """Pick the block row count (sublanes per block)."""
    if rows <= 8:
        # full-extent block is always legal, even if rows < 8
        return rows
    # size by bytes, not rows: bf16/int8 inputs get proportionally taller tiles
    tm = TARGET_BLOCK_BYTES // (LANES * itemsize)
    tm = min(tm, rows)
    # keep >= 4 grid steps when the problem is big enough: lets the pipeline
    # overlap DMA with compute and lets v7x shard the grid across both TCs
    if rows >= 4 * 8:
        tm = min(tm, rows // 4)
    # block_shape (tm, 128) must satisfy the (8, 128) tiling constraint
    tm = max(8, (tm // 8) * 8)
    return tm


def power_relu(x: jax.Array, power: int = POWER) -> jax.Array:
    assert power == 3, "kernel specialized for power=3 (module default)"
    orig_shape = x.shape
    orig_dtype = x.dtype
    total = x.size
    if total == 0:
        return x

    x_flat = jnp.ravel(x)                     # free bitcast
    pad = (-total) % LANES                    # pad only to a multiple of 128
    if pad:
        x_flat = jnp.pad(x_flat, (0, pad))    # only materialized when needed
    rows = (total + pad) // LANES
    x2d = x_flat.reshape(rows, LANES)

    tm = _choose_tm(rows, jnp.dtype(orig_dtype).itemsize)
    grid = (pl.cdiv(rows, tm),)               # cdiv: never drop the tail block

    out2d = pl.pallas_call(
        _power_relu_kernel,
        out_shape=jax.ShapeDtypeStruct((rows, LANES), orig_dtype),
        grid_spec=pltpu.PrefetchScalarGridSpec(
            num_scalar_prefetch=0,
            grid=grid,
            in_specs=[pl.BlockSpec((tm, LANES), lambda i: (i, 0))],
            out_specs=pl.BlockSpec((tm, LANES), lambda i: (i, 0)),
        ),
        compiler_params=pltpu.CompilerParams(
            dimension_semantics=("parallel",),
        ),
    )(x2d)

    if pad:
        return out2d.reshape(-1)[:total].reshape(orig_shape)
    return out2d.reshape(orig_shape)          # free bitcast, no slice pass


if __name__ == "__main__":
    key = jax.random.PRNGKey(0)

    # NCHW input, small shapes: batch=2, channels=4, spatial=16
    x = jax.random.normal(key, (2, 4, 16, 16), dtype=jnp.float32)
    y = power_relu(x)
    jax.block_until_ready(y)
    ref = jnp.power(jnp.maximum(x, 0.0), 3)
    assert y.shape == x.shape and y.dtype == x.dtype
    assert jnp.allclose(y, ref, atol=1e-6, rtol=1e-6), "mismatch vs reference"

    # also exercise the padded / partial-tail-block path
    x2 = jax.random.normal(jax.random.PRNGKey(1), (3, 5, 7, 11), dtype=jnp.float32)
    y2 = power_relu(x2)
    jax.block_until_ready(y2)
    ref2 = jnp.power(jnp.maximum(x2, 0.0), 3)
    assert y2.shape == x2.shape and y2.dtype == x2.dtype
    assert jnp.allclose(y2, ref2, atol=1e-6, rtol=1e-6), "mismatch vs reference (tail)"

    print("KERNEL_OK")
</pallas_src>

<mosaic_0001>
module attributes {stable_mosaic.version = 11 : i64} {
  func.func @_power_relu_kernel(%arg0: i32, %arg1: memref<16x128xf32, #tpu.memory_space<vmem>>, %arg2: memref<16x128xf32, #tpu.memory_space<vmem>>) attributes {dimension_semantics = [#tpu.dimension_semantics<parallel>], iteration_bounds = array<i64: 1>, scalar_prefetch = 0 : i64, scratch_operands = 0 : i64, tpu.core_type = #tpu.core_type<tc>, window_params = [{transform_indices = @transform_0, window_bounds = array<i64: 16, 128>}, {transform_indices = @transform_1, window_bounds = array<i64: 16, 128>}]} {
    %c0 = arith.constant 0 : index
    %c0_0 = arith.constant 0 : index
    %0 = vector.load %arg1[%c0, %c0_0] : memref<16x128xf32, #tpu.memory_space<vmem>>, vector<16x128xf32>
    %cst = arith.constant 0.000000e+00 : f32
    %1 = vector.broadcast %cst : f32 to vector<16x128xf32>
    %2 = arith.maximumf %0, %1 : vector<16x128xf32>
    %3 = arith.mulf %2, %2 : vector<16x128xf32>
    %4 = arith.mulf %3, %2 : vector<16x128xf32>
    %c0_1 = arith.constant 0 : index
    %c0_2 = arith.constant 0 : index
    %5 = vector.load %arg2[%c0_1, %c0_2] : memref<16x128xf32, #tpu.memory_space<vmem>>, vector<16x128xf32>
    tpu.vector_store %arg2[%c0_1, %c0_2], %4 {strides = array<i32>} : memref<16x128xf32, #tpu.memory_space<vmem>>, vector<16x128xf32>,
    return
  }
  func.func @transform_0(%arg0: i32) -> (i32, i32) {
    %c0_i32 = arith.constant 0 : i32
    %c0_i32_0 = arith.constant 0 : i32
    return %arg0, %c0_i32 : i32, i32
  }
  func.func @transform_1(%arg0: i32) -> (i32, i32) {
    %c0_i32 = arith.constant 0 : i32
    %c0_i32_0 = arith.constant 0 : i32
    return %arg0, %c0_i32 : i32, i32
  }
}

</mosaic_0001>

<llo_original>
// kernel: tpu_custom_call.1
$region0: #{tpu_custom_call.1}
  #allocation0 [shape = 'u32[]', space=smem, size = 0x4, offset = 0x4, fixed_abs, tag = 'smem constant byte address 0x4 - core index']
  #allocation1 [shape = 'u32[72,128]{1,0:T(1,128)}', space=vmem, size = 0x9000, scoped, tag = 'internal scratch']
  %s0 = inlined_call_operand.hbm [shape: f32[16,128], index: 0, kind: input, shape index: {}]
  %s1 = inlined_call_operand.hbm [shape: f32[16,128], index: 1, kind: output, shape index: {}]
  %s2 = sld [smem:[#allocation0]]
  $region18: #{tpu_custom_call.1} parent=0
    _
  %s4 = ssub.s32 1, %s2
  %s5 = scalar_select 0, %s4, %s2
  $region1: #{tpu_custom_call.1} parent=0
    #allocation2 [shape = 'u8[8192]{0}', space=vmem, size = 0x2000, scoped, tag = 'input window, operand 0, single buffered']
    #allocation3 [shape = 's32[1]{0}', space=sflag, size = 0x4, scoped, tag = 'scoped memory for tpu_custom_call.1']
    #allocation4 [shape = 's32[1]{0}', space=sflag, size = 0x4, scoped, tag = 'scoped memory for tpu_custom_call.1']
    #allocation5 [shape = 'u8[8192]{0}', space=vmem, size = 0x2000, scoped, tag = 'output window, operand 0, single buffered']
    %6 = vsyncpa [#allocation3], 0
    %7 = vsyncpa [#allocation4], 0
    // Predicated region
    $region2: #{tpu_custom_call.1} parent=1 // pred_check
      _
    $region3: #{tpu_custom_call.1} parent=1 // pred_check_branch
      %9 = sbr.rel (0) target = $region5
    $region4: #{tpu_custom_call.1} parent=1 // pred_region
      %11 = vsyncadd [#allocation3], 0
      %s12 = sshll.u32 %s0, 4
      %s13 = int_to_ptr.hbm [resolvable:$true] %s12
      %s14 = sshll.u32 [#allocation2], 4
      %s15 = int_to_ptr.vmem [resolvable:$true] %s14
      %20 = dma.hbm_to_vmem [thread:$0]  %s13, 256, %s15, [#allocation3], 128, 128, 8
    $region5: #{tpu_custom_call.1} parent=1 // pred_fallthru
      _
    // Predicated region
    $region6: #{tpu_custom_call.1} parent=1 // pred_check
      _
    $region7: #{tpu_custom_call.1} parent=1 // pred_check_branch
      %22 = sbr.rel (0) target = $region9
    $region8: #{tpu_custom_call.1} parent=1 // pred_region
      %24 = dma.done [#allocation3], 256
    $region9: #{tpu_custom_call.1} parent=1 // pred_fallthru
      _
    %v25 = vld [vmem:[#allocation2] sm:$0xff]
    %v26 = vld [vmem:[#allocation2 + $0x8] sm:$0xff]
    %v27 = vmax.f32 %v25, 0.0
    %v28 = vmax.f32 %v26, 0.0
    %v29 = vmul.f32 %v27, %v27
    %v30 = vmul.f32 %v28, %v28
    %v31 = vmul.f32 %v29, %v27
    %v32 = vmul.f32 %v30, %v28
    %33 = vst [vmem:[#allocation5] sm:$0xff] %v31
    %34 = vst [vmem:[#allocation5 + $0x8] sm:$0xff] %v32
    // Predicated region
    $region10: #{tpu_custom_call.1} parent=1 // pred_check
      _
    $region11: #{tpu_custom_call.1} parent=1 // pred_check_branch
      %36 = sbr.rel (0) target = $region13
    $region12: #{tpu_custom_call.1} parent=1 // pred_region
      %38 = vsyncadd [#allocation4], 0
      %s39 = sshll.u32 [#allocation5], 4
      %s40 = int_to_ptr.vmem [resolvable:$true] %s39
      %s41 = sshll.u32 %s1, 4
      %s42 = int_to_ptr.hbm [resolvable:$true] %s41
      %47 = dma.vmem_to_hbm [thread:$0]  %s40, 256, %s42, [#allocation4], 128, 128, 8
    $region13: #{tpu_custom_call.1} parent=1 // pred_fallthru
      _
    // Predicated region
    $region14: #{tpu_custom_call.1} parent=1 // pred_check
      _
    $region15: #{tpu_custom_call.1} parent=1 // pred_check_branch
      %49 = sbr.rel (0) target = $region17
    $region16: #{tpu_custom_call.1} parent=1 // pred_region
      %51 = dma.done [#allocation4], 256
    $region17: #{tpu_custom_call.1} parent=1 // pred_fallthru
      _
    %52 = vsyncpa [#allocation3], 1
    %53 = vsyncpa [#allocation4], 1

</llo_original>
